<compile_context>
chip_gen: v6e
topology: v6e:2x2x1
jax: 0.10.0
libtpu: 0.0.40
codegen_flags: <defaults>
</compile_context>

<pallas_src>
import functools

import jax
import jax.numpy as jnp
from jax import lax
from jax.experimental import pallas as pl
from jax.experimental.pallas import tpu as pltpu


def _contrastive_kernel(o1_ref, o2_ref, t_ref, out_ref, *, margin, batch, tb, ragged):
    # o1_ref, o2_ref: (TB, D) native dtype; t_ref: (TB, 1) f32;
    # out_ref: (1, 8, 128) f32 per-tile partial-sum slab.
    a = o1_ref[...].astype(jnp.float32)
    b = o2_ref[...].astype(jnp.float32)
    diff = b - a                                            # (TB, D)
    d = jnp.sum(diff * diff, axis=1, keepdims=True)         # (TB, 1) == .pow(2).sum(1)

    t = t_ref[...]                                          # (TB, 1) f32 labels
    hinge = jnp.maximum(margin - jnp.sqrt(d), 0.0)          # relu(margin - sqrt(d))
    losses = 0.5 * (t * d + (1.0 - t) * hinge * hinge)      # (TB, 1)

    if ragged:
        # Emitted only when B % TB != 0.  Mask BEFORE the reduction so garbage
        # block padding (possibly Inf/NaN) never reaches the sum; jnp.where
        # does not propagate NaN from the unselected branch.
        row = pl.program_id(0) * tb + lax.broadcasted_iota(jnp.int32, losses.shape, 0)
        losses = jnp.where(row < batch, losses, 0.0)

    partial = jnp.sum(losses)                               # scalar partial sum
    # Lane-dense unmasked store (4 KiB per tile); wrapper reads [:, 0, 0].
    out_ref[...] = jnp.broadcast_to(partial, out_ref.shape).astype(jnp.float32)


def _choose_block_rows(batch, dim, itemsize, block_rows):
    row_bytes = dim * itemsize
    if block_rows is None:
        # ~2 MiB per input tile in its native dtype.
        tb = max(8, (2 * 1024 * 1024) // row_bytes)
        # v7x megacore: guarantee >= 2 "parallel" grid steps whenever the whole
        # batch is more than ~1 MiB per input (otherwise the 2nd TC sits idle).
        if batch * row_bytes > (1 << 20) and tb >= batch:
            tb = -(-batch // 2)                             # ceil(batch / 2)
    else:
        tb = int(block_rows)
    if tb >= batch:
        return batch                                        # full-extent tile (always legal)
    return max(8, (tb // 8) * 8)                            # multiple of 8 when tiling


def contrastive_loss(output1, output2, target, margin, size_average=True,
                     block_rows=None):
    """output1, output2: (B, D); target: (B,) with 1 = same class, 0 = different."""
    B, D = output1.shape
    itemsize = jnp.dtype(output1.dtype).itemsize
    t = target.astype(jnp.float32).reshape(B, 1)

    TB = _choose_block_rows(B, D, itemsize, block_rows)
    n_tiles = pl.cdiv(B, TB)
    ragged = (B % TB) != 0

    # VMEM budget: 2 inputs x 2 pipeline buffers x native tile, lane-padded
    # (TB,1) target buffers, (1,8,128) output buffers, plus ~3x the f32 tile
    # for upcast / diff / diff^2 temporaries; +50% headroom, clamped to the
    # smallest physical VMEM (v7x: 64 MiB per TensorCore).
    in_bytes = 2 * 2 * TB * D * itemsize
    tgt_bytes = 2 * TB * 128 * 4
    out_bytes = 2 * 8 * 128 * 4
    tmp_bytes = 3 * TB * D * 4
    vmem_limit = int(1.5 * (in_bytes + tgt_bytes + out_bytes + tmp_bytes)) + (2 << 20)
    vmem_limit = min(max(vmem_limit, 16 << 20), 64 << 20)

    kernel = functools.partial(_contrastive_kernel, margin=float(margin),
                               batch=B, tb=TB, ragged=ragged)

    cost = pl.CostEstimate(
        flops=int(3 * B * D + 8 * B),
        transcendentals=int(B),
        bytes_accessed=int(2 * B * D * itemsize + B * 4 + n_tiles * 8 * 128 * 4),
    )

    partials = pl.pallas_call(
        kernel,
        out_shape=jax.ShapeDtypeStruct((n_tiles, 8, 128), jnp.float32),
        grid=(n_tiles,),
        in_specs=[
            pl.BlockSpec((TB, D), lambda i: (i, 0)),        # output1 tile (native dtype)
            pl.BlockSpec((TB, D), lambda i: (i, 0)),        # output2 tile (native dtype)
            pl.BlockSpec((TB, 1), lambda i: (i, 0)),        # target tile (f32)
        ],
        out_specs=pl.BlockSpec((1, 8, 128), lambda i: (i, 0, 0)),
        compiler_params=pltpu.CompilerParams(
            dimension_semantics=("parallel",),
            vmem_limit_bytes=vmem_limit,
        ),
        cost_estimate=cost,
    )(output1, output2, t)

    total = jnp.sum(partials[:, 0, 0])
    if size_average:
        total = total / jnp.float32(B)
    return total


def _reference(output1, output2, target, margin, size_average=True):
    o1 = output1.astype(jnp.float32)
    o2 = output2.astype(jnp.float32)
    tgt = target.astype(jnp.float32)
    distances = jnp.sum((o2 - o1) ** 2, axis=1)
    losses = 0.5 * (
        tgt * distances
        + (1.0 - tgt) * jnp.maximum(margin - jnp.sqrt(distances), 0.0) ** 2
    )
    return jnp.mean(losses) if size_average else jnp.sum(losses)


if __name__ == "__main__":
    key = jax.random.PRNGKey(0)
    margin = 1.0
    k1, k2, k3, k4, k5, k6 = jax.random.split(key, 6)

    # --- test 1: small f32 case (B=8, D=32), single full-extent tile, mean ---
    B, D = 8, 32
    o1 = jax.random.normal(k1, (B, D), dtype=jnp.float32)
    o2 = jax.random.normal(k2, (B, D), dtype=jnp.float32)
    tgt = jax.random.bernoulli(k3, 0.5, (B,)).astype(jnp.int32)

    loss = contrastive_loss(o1, o2, tgt, margin, size_average=True)
    loss = jax.block_until_ready(loss)
    ref = _reference(o1, o2, tgt, margin, size_average=True)
    assert jnp.allclose(loss, ref, rtol=1e-5, atol=1e-5), (loss, ref)

    # --- test 2: bf16, multi-tile ragged batch (B=40, TB=16 -> grid of 3), sum ---
    B2, D2 = 40, 32
    o1b = jax.random.normal(k4, (B2, D2), dtype=jnp.float32).astype(jnp.bfloat16)
    o2b = jax.random.normal(k5, (B2, D2), dtype=jnp.float32).astype(jnp.bfloat16)
    tgtb = jax.random.bernoulli(k6, 0.5, (B2,)).astype(jnp.int32)

    loss2 = contrastive_loss(o1b, o2b, tgtb, margin, size_average=False,
                             block_rows=16)
    loss2 = jax.block_until_ready(loss2)
    ref2 = _reference(o1b, o2b, tgtb, margin, size_average=False)
    assert jnp.allclose(loss2, ref2, rtol=1e-4, atol=1e-3), (loss2, ref2)

    print("KERNEL_OK")
</pallas_src>

<mosaic_0001>
module attributes {stable_mosaic.version = 11 : i64} {
  func.func @_contrastive_kernel(%arg0: i32, %arg1: memref<8x32xf32, #tpu.memory_space<vmem>>, %arg2: memref<8x32xf32, #tpu.memory_space<vmem>>, %arg3: memref<8x1xf32, #tpu.memory_space<vmem>>, %arg4: memref<1x8x128xf32, #tpu.memory_space<vmem>>) attributes {dimension_semantics = [#tpu.dimension_semantics<parallel>], iteration_bounds = array<i64: 1>, scalar_prefetch = 0 : i64, scratch_operands = 0 : i64, tpu.core_type = #tpu.core_type<tc>, window_params = [{transform_indices = @transform_0, window_bounds = array<i64: 8, 32>}, {transform_indices = @transform_1, window_bounds = array<i64: 8, 32>}, {transform_indices = @transform_2, window_bounds = array<i64: 8, 1>}, {transform_indices = @transform_3, window_bounds = array<i64: 1, 8, 128>}]} {
    %c0 = arith.constant 0 : index
    %c0_0 = arith.constant 0 : index
    %0 = vector.load %arg1[%c0, %c0_0] : memref<8x32xf32, #tpu.memory_space<vmem>>, vector<8x32xf32>
    %c0_1 = arith.constant 0 : index
    %c0_2 = arith.constant 0 : index
    %1 = vector.load %arg2[%c0_1, %c0_2] : memref<8x32xf32, #tpu.memory_space<vmem>>, vector<8x32xf32>
    %2 = arith.subf %1, %0 : vector<8x32xf32>
    %3 = arith.mulf %2, %2 : vector<8x32xf32>
    %cst = arith.constant dense<0.000000e+00> : vector<8xf32>
    %4 = vector.multi_reduction <add>, %3, %cst [1] : vector<8x32xf32> to vector<8xf32>
    %5 = vector.shape_cast %4 : vector<8xf32> to vector<8x1xf32>
    %c0_3 = arith.constant 0 : index
    %c0_4 = arith.constant 0 : index
    %6 = vector.load %arg3[%c0_3, %c0_4] : memref<8x1xf32, #tpu.memory_space<vmem>>, vector<8x1xf32>
    %7 = math.sqrt %5 : vector<8x1xf32>
    %cst_5 = arith.constant 1.000000e+00 : f32
    %8 = vector.broadcast %cst_5 : f32 to vector<8x1xf32>
    %9 = arith.subf %8, %7 : vector<8x1xf32>
    %cst_6 = arith.constant 0.000000e+00 : f32
    %10 = vector.broadcast %cst_6 : f32 to vector<8x1xf32>
    %11 = arith.maximumf %9, %10 : vector<8x1xf32>
    %12 = arith.mulf %6, %5 : vector<8x1xf32>
    %cst_7 = arith.constant 1.000000e+00 : f32
    %13 = vector.broadcast %cst_7 : f32 to vector<8x1xf32>
    %14 = arith.subf %13, %6 : vector<8x1xf32>
    %15 = arith.mulf %14, %11 : vector<8x1xf32>
    %16 = arith.mulf %15, %11 : vector<8x1xf32>
    %17 = arith.addf %12, %16 : vector<8x1xf32>
    %cst_8 = arith.constant 5.000000e-01 : f32
    %18 = vector.broadcast %cst_8 : f32 to vector<8x1xf32>
    %19 = arith.mulf %18, %17 : vector<8x1xf32>
    %20 = vector.shape_cast %19 : vector<8x1xf32> to vector<1x8x1xf32>
    %cst_9 = arith.constant dense<0.000000e+00> : vector<1xf32>
    %21 = vector.multi_reduction <add>, %20, %cst_9 [1, 2] : vector<1x8x1xf32> to vector<1xf32>
    %22 = vector.shape_cast %21 : vector<1xf32> to vector<1x1x1xf32>
    %23 = vector.extract %22[0, 0, 0] : f32 from vector<1x1x1xf32>
    %24 = vector.broadcast %23 : f32 to vector<1x8x128xf32>
    %c0_10 = arith.constant 0 : index
    %c0_11 = arith.constant 0 : index
    %c0_12 = arith.constant 0 : index
    %25 = vector.load %arg4[%c0_10, %c0_11, %c0_12] : memref<1x8x128xf32, #tpu.memory_space<vmem>>, vector<1x8x128xf32>
    tpu.vector_store %arg4[%c0_10, %c0_11, %c0_12], %24 {strides = array<i32>} : memref<1x8x128xf32, #tpu.memory_space<vmem>>, vector<1x8x128xf32>,
    return
  }
  func.func @transform_0(%arg0: i32) -> (i32, i32) {
    %c0_i32 = arith.constant 0 : i32
    %c0_i32_0 = arith.constant 0 : i32
    return %arg0, %c0_i32 : i32, i32
  }
  func.func @transform_1(%arg0: i32) -> (i32, i32) {
    %c0_i32 = arith.constant 0 : i32
    %c0_i32_0 = arith.constant 0 : i32
    return %arg0, %c0_i32 : i32, i32
  }
  func.func @transform_2(%arg0: i32) -> (i32, i32) {
    %c0_i32 = arith.constant 0 : i32
    %c0_i32_0 = arith.constant 0 : i32
    return %arg0, %c0_i32 : i32, i32
  }
  func.func @transform_3(%arg0: i32) -> (i32, i32, i32) {
    %c0_i32 = arith.constant 0 : i32
    %c0_i32_0 = arith.constant 0 : i32
    %c0_i32_1 = arith.constant 0 : i32
    return %arg0, %c0_i32, %c0_i32_0 : i32, i32, i32
  }
}

</mosaic_0001>

<llo_original>
// kernel: tpu_custom_call.1
$region0: #{tpu_custom_call.1}
  #allocation0 [shape = 'u32[]', space=smem, size = 0x4, offset = 0x4, fixed_abs, tag = 'smem constant byte address 0x4 - core index']
  #allocation1 [shape = 'u32[144,128]{1,0:T(1,128)}', space=vmem, size = 0x12000, scoped, tag = 'internal scratch']
  %s0 = inlined_call_operand.vmem [shape: f32[8,32], index: 0, kind: input, shape index: {}]
  %s1 = inlined_call_operand.hbm [shape: f32[8,32], index: 1, kind: input, shape index: {}]
  %s2 = inlined_call_operand.vmem [shape: f32[8,1], index: 2, kind: input, shape index: {}]
  %s3 = inlined_call_operand.hbm [shape: f32[1,8,128], index: 3, kind: output, shape index: {}]
  %s4 = sld [smem:[#allocation0]]
  $region26: #{tpu_custom_call.1} parent=0
    _
  %s6 = ssub.s32 1, %s4
  %s7 = scalar_select 0, %s6, %s4
  $region1: #{tpu_custom_call.1} parent=0
    #allocation2 [shape = 'u8[4096]{0}', space=vmem, size = 0x1000, scoped, tag = 'input window, operand 1, single buffered']
    #allocation3 [shape = 's32[1]{0}', space=sflag, size = 0x4, scoped, tag = 'scoped memory for tpu_custom_call.1']
    #allocation4 [shape = 's32[1]{0}', space=sflag, size = 0x4, scoped, tag = 'scoped memory for tpu_custom_call.1']
    #allocation5 [shape = 'u8[4096]{0}', space=vmem, size = 0x1000, scoped, tag = 'output window, operand 0, single buffered']
    %8 = vsyncpa [#allocation3], 0
    %9 = vsyncpa [#allocation4], 0
    // Predicated region
    $region2: #{tpu_custom_call.1} parent=1 // pred_check
      _
    $region3: #{tpu_custom_call.1} parent=1 // pred_check_branch
      %11 = sbr.rel (0) target = $region5
    $region4: #{tpu_custom_call.1} parent=1 // pred_region
      _
    $region5: #{tpu_custom_call.1} parent=1 // pred_fallthru
      _
    // Predicated region
    $region6: #{tpu_custom_call.1} parent=1 // pred_check
      _
    $region7: #{tpu_custom_call.1} parent=1 // pred_check_branch
      %13 = sbr.rel (0) target = $region9
    $region8: #{tpu_custom_call.1} parent=1 // pred_region
      %s15 = ssub.s32 128, 128
      %16 = vsyncadd [#allocation3], %s15
      %s18 = sshll.u32 [#allocation2], 4
      %s19 = int_to_ptr.vmem [resolvable:$true] %s18
      %21 = dma.hbm_to_vmem [thread:$0]  %s1, 128, %s19, [#allocation3]
    $region9: #{tpu_custom_call.1} parent=1 // pred_fallthru
      _
    // Predicated region
    $region10: #{tpu_custom_call.1} parent=1 // pred_check
      _
    $region11: #{tpu_custom_call.1} parent=1 // pred_check_branch
      %23 = sbr.rel (0) target = $region13
    $region12: #{tpu_custom_call.1} parent=1 // pred_region
      _
    $region13: #{tpu_custom_call.1} parent=1 // pred_fallthru
      _
    // Predicated region
    $region14: #{tpu_custom_call.1} parent=1 // pred_check
      _
    $region15: #{tpu_custom_call.1} parent=1 // pred_check_branch
      %25 = sbr.rel (0) target = $region17
    $region16: #{tpu_custom_call.1} parent=1 // pred_region
      %26 = dma.done [#allocation3], 128
    $region17: #{tpu_custom_call.1} parent=1 // pred_fallthru
      _
    %v27 = vld [vmem:[%s0] sm:$0xff]
    %v28 = vld [vmem:[#allocation2] sm:$0xff]
    %v29 = vsub.f32 %v28, %v27
    %v30 = vmul.f32 %v29, %v29
    %vm31 = vcmask 261120
    %v32 = vsel %vm31, %v30, 0.0
    %33 = vadd.xlane.f32.xlu0 %v32
    %v34 = vpop.xlane.xlu0 %33
    %v35 = vld [vmem:[%s2] sm:$0xff]
    %v36 = vrsqrt.pop %v34
    %v37 = vmul.f32 %v34, %v36
    %vm38 = vcmp.eq.f32.partialorder %v34, inf
    %v39 = vsel %vm38, %v34, %v37
    %vm40 = vcmp.eq.f32.partialorder %v34, 0.0
    %v41 = vand.u32 %v34, 2147483648
    %v42 = vsel %vm40, %v41, %v39
    %v43 = vsub.f32 1.0, %v42
    %v44 = vmax.f32 %v43, 0.0
    %v45 = vmul.f32 %v35, %v34
    %v46 = vsub.f32 1.0, %v35
    %v47 = vmul.f32 %v46, %v44
    %v48 = vmul.f32 %v47, %v44
    %v49 = vadd.f32 %v45, %v48
    %v50 = vmul.f32 %v49, 0.5
    %vm51 = vcmask 7168
    %v52 = vsel %vm51, %v50, 0.0
    %53 = vadd.xlane.f32.xlu0 %v52
    %v54 = vpop.xlane.xlu0 %53
    %v55 = vrot.slane %v54, 4
    %v56 = vadd.f32 %v54, %v55
    %v57 = vrot.slane %v56, 2
    %v58 = vadd.f32 %v56, %v57
    %v59 = vrot.slane %v58, 1
    %v60 = vadd.f32 %v58, %v59
    %s61 = vtos %v60
    %v62 = vstv %s61
    %63 = vst [vmem:[#allocation5] sm:$0xff] %v62
    // Predicated region
    $region18: #{tpu_custom_call.1} parent=1 // pred_check
      _
    $region19: #{tpu_custom_call.1} parent=1 // pred_check_branch
      %65 = sbr.rel (0) target = $region21
    $region20: #{tpu_custom_call.1} parent=1 // pred_region
      %s67 = ssub.s32 128, 128
      %68 = vsyncadd [#allocation4], %s67
      %s70 = sshll.u32 [#allocation5], 4
      %s71 = int_to_ptr.vmem [resolvable:$true] %s70
      %73 = dma.vmem_to_hbm [thread:$0]  %s71, 128, %s3, [#allocation4]
    $region21: #{tpu_custom_call.1} parent=1 // pred_fallthru
      _
    // Predicated region
    $region22: #{tpu_custom_call.1} parent=1 // pred_check
      _
    $region23: #{tpu_custom_call.1} parent=1 // pred_check_branch
      %75 = sbr.rel (0) target = $region25
    $region24: #{tpu_custom_call.1} parent=1 // pred_region
      %76 = dma.done [#allocation4], 128
    $region25: #{tpu_custom_call.1} parent=1 // pred_fallthru
      _
    %77 = vsyncpa [#allocation3], 1
    %78 = vsyncpa [#allocation4], 1

</llo_original>
